<compile_context>
chip_gen: v6e
topology: v6e:2x2x1
jax: 0.10.0
libtpu: 0.0.40
codegen_flags: <defaults>
</compile_context>

<pallas_src>
import functools
import numpy as np

import jax
import jax.numpy as jnp
from jax import lax
from jax.experimental import pallas as pl
from jax.experimental.pallas import tpu as pltpu


_VMEM_LIMIT = 48 * 1024 * 1024   # explicit scoped-VMEM budget (v5e default is 16 MiB)


def _round_up(x, m):
    return ((x + m - 1) // m) * m


def _pad2(a, rows, cols):
    return jnp.pad(a, ((0, rows - a.shape[0]), (0, cols - a.shape[1])))


def _circulant(v):
    """Circ(v)[..., j, k] = v[..., (j + k) % d], so that ccorr(a, v) == a @ Circ(v)."""
    d = v.shape[-1]
    idx = (np.arange(d)[:, None] + np.arange(d)[None, :]) % d
    return v[..., idx]


# ----------------------------------------------------------------------------
# Kernel A: grouped edge-message matmul  msg = h_src @ W_eff[group]
#           (MoE pattern: per-tile weight picked via scalar-prefetched group id;
#            per-edge norm/3 is already folded into h_src by the wrapper)
# ----------------------------------------------------------------------------
def edge_msg_kernel(gid_ref, h_ref, w_ref, msg_ref):
    del gid_ref  # only consumed by the index_maps
    msg_ref[...] = jnp.dot(h_ref[...], w_ref[0],
                           preferred_element_type=jnp.float32).astype(msg_ref.dtype)


def edge_messages(tile_gid, h, w_eff, *, tile_e):
    e_pad, d_in = h.shape
    d_out = w_eff.shape[2]
    n_tiles = e_pad // tile_e
    return pl.pallas_call(
        edge_msg_kernel,
        out_shape=jax.ShapeDtypeStruct((e_pad, d_out), h.dtype),
        grid_spec=pltpu.PrefetchScalarGridSpec(
            num_scalar_prefetch=1,
            grid=(n_tiles,),
            in_specs=[
                pl.BlockSpec((tile_e, d_in), lambda i, gid: (i, 0)),
                pl.BlockSpec((1, d_in, d_out), lambda i, gid: (gid[i], 0, 0)),
            ],
            out_specs=pl.BlockSpec((tile_e, d_out), lambda i, gid: (i, 0)),
        ),
        compiler_params=pltpu.CompilerParams(
            dimension_semantics=("parallel",),
            vmem_limit_bytes=_VMEM_LIMIT),
    )(tile_gid, h, w_eff)


# ----------------------------------------------------------------------------
# Kernel B: single-pass dst-ordered scatter-sum (local one-hot on the MXU), fused
#           with the self-loop matmul, bias and BN partial statistics.
#           Grid is 1-D over dst-ordered edge tiles; the node-tile block indices
#           are data-dependent via the scalar-prefetched tile->node-tile map.
# ----------------------------------------------------------------------------
def aggregate_kernel(tile_node_ref, first_ref, last_ref,
                     dst_ref, msg_ref, x_ref, wloop_ref, bias_ref,
                     pre_ref, stats_ref, acc_ref, *,
                     node_tile, n_real_nodes):
    j = pl.program_id(0)
    base = tile_node_ref[j] * node_tile

    @pl.when(first_ref[j] == 1)
    def _init():
        # self-loop message; W_loop already folds Circ(loop_rel) @ loop_w / 3
        loop = jnp.dot(x_ref[...], wloop_ref[...],
                       preferred_element_type=jnp.float32)
        acc_ref[...] = loop + bias_ref[...]

    # local one-hot scatter of this edge tile into the node tile (bf16/f32 MXU
    # matmul, f32 accumulation).  Padded edges carry dst = -1 -> all-zero row.
    te = msg_ref.shape[0]
    local = dst_ref[0] - base                                        # (1, TE)
    onehot = (lax.broadcasted_iota(jnp.int32, (node_tile, te), 0)
              == local).astype(msg_ref.dtype)                        # (TN, TE)
    acc_ref[...] += jnp.dot(onehot, msg_ref[...],
                            preferred_element_type=jnp.float32)

    @pl.when(last_ref[j] == 1)
    def _finalize():
        pre = acc_ref[...]
        pre_ref[...] = pre
        rows = lax.broadcasted_iota(jnp.int32, pre.shape, 0)
        mask = (rows < (n_real_nodes - base)).astype(jnp.float32)    # drop padded nodes
        pm = pre * mask
        s1 = jnp.sum(pm, axis=0, keepdims=True)                      # (1, Dop)
        s2 = jnp.sum(pm * pm, axis=0, keepdims=True)                 # (1, Dop)
        stats_ref[...] = jnp.concatenate([s1, s2], axis=0).reshape(stats_ref.shape)


def aggregate_combine(tile_node, is_first, is_last, dst_tiles, msg, x_cd, w_loop,
                      bias, *, node_tile, n_node_tiles, n_real_nodes):
    n_pad, d_in = x_cd.shape
    d_out = w_loop.shape[1]
    n_tiles_d, _, tile_e = dst_tiles.shape
    kernel = functools.partial(aggregate_kernel, node_tile=node_tile,
                               n_real_nodes=n_real_nodes)
    return pl.pallas_call(
        kernel,
        out_shape=(
            jax.ShapeDtypeStruct((n_pad, d_out), jnp.float32),
            jax.ShapeDtypeStruct((n_node_tiles, 2, d_out), jnp.float32),
        ),
        grid_spec=pltpu.PrefetchScalarGridSpec(
            num_scalar_prefetch=3,
            grid=(n_tiles_d,),
            in_specs=[
                pl.BlockSpec((1, 1, tile_e), lambda j, tn, fi, la: (j, 0, 0)),
                pl.BlockSpec((tile_e, d_out), lambda j, tn, fi, la: (j, 0)),
                pl.BlockSpec((node_tile, d_in), lambda j, tn, fi, la: (tn[j], 0)),
                pl.BlockSpec((d_in, d_out), lambda j, tn, fi, la: (0, 0)),
                pl.BlockSpec((1, d_out), lambda j, tn, fi, la: (0, 0)),
            ],
            out_specs=[
                pl.BlockSpec((node_tile, d_out), lambda j, tn, fi, la: (tn[j], 0)),
                pl.BlockSpec((1, 2, d_out), lambda j, tn, fi, la: (tn[j], 0, 0)),
            ],
            scratch_shapes=[pltpu.VMEM((node_tile, d_out), jnp.float32)],
        ),
        compiler_params=pltpu.CompilerParams(
            dimension_semantics=("arbitrary",),
            vmem_limit_bytes=_VMEM_LIMIT),
    )(tile_node, is_first, is_last, dst_tiles, msg, x_cd, w_loop, bias)


# ----------------------------------------------------------------------------
# Kernel C: BatchNorm apply — pure lane-dense FMA with pre-folded scale/shift.
# ----------------------------------------------------------------------------
def bn_apply_kernel(pre_ref, scale_ref, shift_ref, out_ref):
    out_ref[...] = pre_ref[...] * scale_ref[...] + shift_ref[...]


def bn_apply(pre, scale, shift, *, node_tile):
    n_pad, d_out = pre.shape
    return pl.pallas_call(
        bn_apply_kernel,
        out_shape=jax.ShapeDtypeStruct((n_pad, d_out), jnp.float32),
        grid_spec=pltpu.PrefetchScalarGridSpec(
            num_scalar_prefetch=0,
            grid=(n_pad // node_tile,),
            in_specs=[
                pl.BlockSpec((node_tile, d_out), lambda i: (i, 0)),
                pl.BlockSpec((1, d_out), lambda i: (0, 0)),
                pl.BlockSpec((1, d_out), lambda i: (0, 0)),
            ],
            out_specs=pl.BlockSpec((node_tile, d_out), lambda i: (i, 0)),
        ),
        compiler_params=pltpu.CompilerParams(
            dimension_semantics=("parallel",),
            vmem_limit_bytes=_VMEM_LIMIT),
    )(pre, scale, shift)


# ----------------------------------------------------------------------------
# Kernel D: relation transform  rel @ w_rel
# ----------------------------------------------------------------------------
def matmul_kernel(a_ref, b_ref, o_ref):
    o_ref[...] = jnp.dot(a_ref[...], b_ref[...],
                         preferred_element_type=jnp.float32)


def rel_transform(rel_pad, w_rel_pad, *, tile_m):
    m, k = rel_pad.shape
    n = w_rel_pad.shape[1]
    return pl.pallas_call(
        matmul_kernel,
        out_shape=jax.ShapeDtypeStruct((m, n), jnp.float32),
        grid_spec=pltpu.PrefetchScalarGridSpec(
            num_scalar_prefetch=0,
            grid=(m // tile_m,),
            in_specs=[
                pl.BlockSpec((tile_m, k), lambda i: (i, 0)),
                pl.BlockSpec((k, n), lambda i: (0, 0)),
            ],
            out_specs=pl.BlockSpec((tile_m, n), lambda i: (i, 0)),
        ),
        compiler_params=pltpu.CompilerParams(
            dimension_semantics=("parallel",),
            vmem_limit_bytes=_VMEM_LIMIT),
    )(rel_pad, w_rel_pad)


# ----------------------------------------------------------------------------
# Forward wrapper
# ----------------------------------------------------------------------------
def compgcn_forward(x, rel, edge_src, edge_dst, edge_type, edge_norm, params,
                    *, edge_tile=None, node_tile=None, compute_dtype=jnp.float32):
    # compute_dtype=jnp.bfloat16 is the recommended production setting on
    # v5e / v6e / v7x (bf16-native MXU, half the streamed bytes); f32 is kept as
    # the default here for tight numerical validation.
    N, Din = int(x.shape[0]), int(x.shape[1])
    R = int(rel.shape[0])
    E = int(edge_type.shape[0])
    Dout = int(params["in_w"].shape[1])
    T = 2 * R                                    # in-direction + out-direction weights

    # ---- padded sizes (lane-dense 128-wide features, 8-aligned row tiles) ----
    Dp = _round_up(Din, 128)
    Dop = _round_up(Dout, 128)
    if node_tile is None:
        node_tile = min(512, _round_up(N, 8))
    Np = _round_up(N, node_tile)
    n_node_tiles = Np // node_tile
    if edge_tile is None:
        edge_tile = min(2048, max(8, _round_up(max(1, (E + T - 1) // T), 8)))

    # ---- fold ccorr into the weights (wrapper precompute) ----
    hp = lax.Precision.HIGHEST
    circ_rel = _circulant(rel.astype(jnp.float32))                        # (R, Din, Din)
    w_eff = jnp.concatenate(
        [jnp.einsum("rjk,ko->rjo", circ_rel,
                    params["in_w"].astype(jnp.float32), precision=hp),
         jnp.einsum("rjk,ko->rjo", circ_rel,
                    params["out_w"].astype(jnp.float32), precision=hp)], axis=0)
    w_eff = jnp.pad(w_eff, ((0, 0), (0, Dp - Din),
                            (0, Dop - Dout))).astype(compute_dtype)       # (2R, Dp, Dop)
    circ_loop = _circulant(params["loop_rel"][0].astype(jnp.float32))     # (Din, Din)
    w_loop = jnp.dot(circ_loop, params["loop_w"].astype(jnp.float32),
                     precision=hp) / 3.0                                  # fold the 1/3
    w_loop = _pad2(w_loop, Dp, Dop).astype(compute_dtype)

    # ---- host-side edge preprocessing ----
    src_np = np.asarray(edge_src, np.int32)
    dst_np = np.asarray(edge_dst, np.int32)
    typ_np = np.asarray(edge_type, np.int32)
    nrm_np = np.asarray(edge_norm, np.float32)
    eff_type = typ_np + R * (np.arange(E) >= (E // 2)).astype(np.int32)

    # (a) relation-grouped order for Kernel A (MoE weight selection), each group
    #     padded to a multiple of edge_tile; remember each edge's msg-row position.
    src_p, nrm_p, tile_gid = [], [], []
    pos_of_edge = np.zeros(E, np.int32)
    row = 0
    for t in range(T):
        sel = np.nonzero(eff_type == t)[0]
        c = int(sel.size)
        if c == 0:
            continue
        cp = _round_up(c, edge_tile)
        pos_of_edge[sel] = row + np.arange(c, dtype=np.int32)
        src_p.append(np.concatenate([src_np[sel], np.zeros(cp - c, np.int32)]))
        # the /3 of the reduce step is folded into the per-edge norm; pads get 0
        nrm_p.append(np.concatenate([nrm_np[sel] / 3.0, np.zeros(cp - c, np.float32)]))
        tile_gid.extend([t] * (cp // edge_tile))
        row += cp
    src_p = np.concatenate(src_p).astype(np.int32)
    nrm_p = np.concatenate(nrm_p).astype(np.float32)
    tile_gid = np.asarray(tile_gid, np.int32)

    # (b) dst-node-tile-grouped order for Kernel B's single sweep; each node tile
    #     gets >= 1 edge tile (so every pre/stat block is initialized exactly once).
    dst_tile_of_edge = dst_np // node_tile
    perm_d, dst_d = [], []
    tile_node, is_first, is_last = [], [], []
    for i in range(n_node_tiles):
        sel = np.nonzero(dst_tile_of_edge == i)[0]
        c = int(sel.size)
        cp = max(edge_tile, _round_up(c, edge_tile))
        perm_d.append(np.concatenate([pos_of_edge[sel], np.zeros(cp - c, np.int32)]))
        dst_d.append(np.concatenate([dst_np[sel], np.full(cp - c, -1, np.int32)]))
        nt = cp // edge_tile
        tile_node.extend([i] * nt)
        is_first.extend([1] + [0] * (nt - 1))
        is_last.extend([0] * (nt - 1) + [1])
    perm_d = np.concatenate(perm_d).astype(np.int32)
    dst_d = np.concatenate(dst_d).astype(np.int32)
    tile_node = np.asarray(tile_node, np.int32)
    is_first = np.asarray(is_first, np.int32)
    is_last = np.asarray(is_last, np.int32)
    n_tiles_d = int(tile_node.shape[0])

    # ---- padded device operands ----
    x_pad = _pad2(x.astype(jnp.float32), Np, Dp)
    # norm/3 folded into the gather (padded edges have norm 0 -> exactly-zero msg)
    h_src = (x_pad[jnp.asarray(src_p)] *
             jnp.asarray(nrm_p)[:, None]).astype(compute_dtype)           # (E_pad_A, Dp)
    x_cd = x_pad.astype(compute_dtype)
    bias_row = jnp.pad(params["bias"].reshape(1, Dout).astype(jnp.float32),
                       ((0, 0), (0, Dop - Dout)))
    gamma_row = jnp.pad(params["bn_gamma"].reshape(1, Dout).astype(jnp.float32),
                        ((0, 0), (0, Dop - Dout)))
    beta_row = jnp.pad(params["bn_beta"].reshape(1, Dout).astype(jnp.float32),
                       ((0, 0), (0, Dop - Dout)))

    # ---- kernels ----
    msg = edge_messages(jnp.asarray(tile_gid), h_src, w_eff, tile_e=edge_tile)
    # reorder messages to dst-node-tile order (single XLA gather; cheap vs. the
    # old O(n_node_tiles x E_pad) re-streaming of msg)
    msg_d = msg[jnp.asarray(perm_d)]
    dst_tiles = jnp.asarray(dst_d).reshape(n_tiles_d, 1, edge_tile)

    pre, stats = aggregate_combine(
        jnp.asarray(tile_node), jnp.asarray(is_first), jnp.asarray(is_last),
        dst_tiles, msg_d, x_cd, w_loop, bias_row,
        node_tile=node_tile, n_node_tiles=n_node_tiles, n_real_nodes=N)

    # ---- fold BN batch stats once into per-feature scale/shift (tiny XLA reduce) ----
    s = jnp.sum(stats, axis=0)                       # (2, Dop): [sum, sum-of-squares]
    mean = s[0:1, :] * (1.0 / N)
    var = s[1:2, :] * (1.0 / N) - mean * mean        # biased variance (PyTorch BN)
    inv = lax.rsqrt(var + 1e-5)
    scale = gamma_row * inv
    shift = beta_row - mean * scale

    out_pad = bn_apply(pre, scale, shift, node_tile=node_tile)

    tile_r = min(256, _round_up(R, 8))
    Rp = _round_up(R, tile_r)
    rel_pad = _pad2(rel.astype(jnp.float32), Rp, Dp).astype(compute_dtype)
    w_rel_pad = _pad2(params["w_rel"].astype(jnp.float32), Dp, Dop).astype(compute_dtype)
    rel_out_pad = rel_transform(rel_pad, w_rel_pad, tile_m=tile_r)

    return out_pad[:N, :Dout], rel_out_pad[:R, :Dout]


# ----------------------------------------------------------------------------
# Float64 numpy reference (time-domain ccorr + scatter-add) for validation
# ----------------------------------------------------------------------------
def reference_forward_np(x, rel, edge_src, edge_dst, edge_type, edge_norm, params):
    x = np.asarray(x, np.float64)
    rel_ = np.asarray(rel, np.float64)
    p = {k: np.asarray(v, np.float64) for k, v in params.items()}
    src = np.asarray(edge_src)
    dst = np.asarray(edge_dst)
    et = np.asarray(edge_type)
    en = np.asarray(edge_norm, np.float64)
    N, d = x.shape
    E = et.shape[0]
    half = E // 2
    idx = (np.arange(d)[:, None] + np.arange(d)[None, :]) % d

    def ccorr(a, b):                              # a, b: (M, d)
        return np.einsum("mj,mjk->mk", a, b[:, idx])

    comp = ccorr(x[src], rel_[et])
    msg = np.concatenate([comp[:half] @ p["in_w"], comp[half:] @ p["out_w"]], axis=0)
    msg = msg * en[:, None]
    agg = np.zeros((N, p["in_w"].shape[1]))
    np.add.at(agg, dst, msg)
    loop_comp = ccorr(x, np.broadcast_to(p["loop_rel"], x.shape))
    pre = agg / 3.0 + (loop_comp @ p["loop_w"]) / 3.0 + p["bias"]
    mean = pre.mean(axis=0)
    var = ((pre - mean) ** 2).mean(axis=0)        # biased variance (PyTorch BN)
    out = (pre - mean) / np.sqrt(var + 1e-5) * p["bn_gamma"] + p["bn_beta"]
    return out, rel_ @ p["w_rel"]


# ----------------------------------------------------------------------------
def xavier_normal(key, shape, gain):
    fan_sum = shape[0] + shape[1]
    std = gain * np.sqrt(2.0 / fan_sum)
    return (std * jax.random.normal(key, shape, dtype=jnp.float32)).astype(jnp.float32)


if __name__ == "__main__":
    N, Din, Dout, R, E = 16, 32, 32, 4, 16     # nodes, in_ch, out_ch, relations, edges
    key = jax.random.PRNGKey(0)
    keys = jax.random.split(key, 12)
    gain = float(np.sqrt(2.0))                 # nn.init.calculate_gain('relu')

    params = {
        "in_w":     xavier_normal(keys[0], (Din, Dout), gain),
        "out_w":    xavier_normal(keys[1], (Din, Dout), gain),
        "loop_w":   xavier_normal(keys[2], (Din, Dout), gain),
        "w_rel":    xavier_normal(keys[3], (Din, Dout), gain),
        "loop_rel": xavier_normal(keys[4], (1, Din), gain),
        "bias":     jnp.zeros((Dout,), jnp.float32),
        "bn_gamma": jnp.ones((Dout,), jnp.float32),
        "bn_beta":  jnp.zeros((Dout,), jnp.float32),
    }

    x = jax.random.normal(keys[5], (N, Din), dtype=jnp.float32)
    rel = jax.random.normal(keys[6], (R, Din), dtype=jnp.float32)
    edge_src = jax.random.randint(keys[7], (E,), 0, N)
    edge_dst = jax.random.randint(keys[8], (E,), 0, N)
    # first half = forward ("in") edges, second half = reversed ("out") edges
    et_half = jax.random.randint(keys[9], (E // 2,), 0, R // 2)
    edge_type = jnp.concatenate([et_half, et_half + R // 2])
    edge_norm = jax.random.uniform(keys[10], (E,), jnp.float32, 0.1, 1.0)

    ref_out, ref_rel = reference_forward_np(x, rel, edge_src, edge_dst, edge_type,
                                            edge_norm, params)

    # f32 MXU path (primary validation)
    out, rel_out = compgcn_forward(x, rel, edge_src, edge_dst, edge_type, edge_norm,
                                   params)
    jax.block_until_ready((out, rel_out))
    np.testing.assert_allclose(np.asarray(out), ref_out, rtol=1e-2, atol=1e-2)
    np.testing.assert_allclose(np.asarray(rel_out), ref_rel, rtol=1e-2, atol=1e-2)

    # bf16 MXU path (recommended production setting on v5e/v6e/v7x); loose smoke check.
    out_bf, rel_bf = compgcn_forward(x, rel, edge_src, edge_dst, edge_type, edge_norm,
                                     params, compute_dtype=jnp.bfloat16)
    jax.block_until_ready((out_bf, rel_bf))
    np.testing.assert_allclose(np.asarray(out_bf), ref_out, rtol=1e-1, atol=1e-1)
    np.testing.assert_allclose(np.asarray(rel_bf), ref_rel, rtol=1e-1, atol=1e-1)

    print("KERNEL_OK")
</pallas_src>

<mosaic_0001>
module attributes {stable_mosaic.version = 11 : i64} {
  func.func @edge_msg_kernel(%arg0: i32, %arg1: memref<4xi32, #tpu.memory_space<smem>>, %arg2: memref<8x128xf32, #tpu.memory_space<vmem>>, %arg3: memref<1x128x128xf32, #tpu.memory_space<vmem>>, %arg4: memref<8x128xf32, #tpu.memory_space<vmem>>) attributes {dimension_semantics = [#tpu.dimension_semantics<parallel>], iteration_bounds = array<i64: 4>, scalar_prefetch = 1 : i64, scratch_operands = 0 : i64, tpu.core_type = #tpu.core_type<tc>, window_params = [{transform_indices = @transform_0, window_bounds = array<i64: 8, 128>}, {transform_indices = @transform_1, window_bounds = array<i64: 1, 128, 128>}, {transform_indices = @transform_2, window_bounds = array<i64: 8, 128>}]} {
    %c0 = arith.constant 0 : index
    %c0_0 = arith.constant 0 : index
    %0 = vector.load %arg2[%c0, %c0_0] : memref<8x128xf32, #tpu.memory_space<vmem>>, vector<8x128xf32>
    %c0_1 = arith.constant 0 : index
    %c0_2 = arith.constant 0 : index
    %c0_3 = arith.constant 0 : index
    %1 = vector.load %arg3[%c0_1, %c0_2, %c0_3] : memref<1x128x128xf32, #tpu.memory_space<vmem>>, vector<1x128x128xf32>
    %2 = vector.shape_cast %1 : vector<1x128x128xf32> to vector<128x128xf32>
    %cst = arith.constant dense<0.000000e+00> : vector<8x128xf32>
    %3 = tpu.matmul %0, %2, %cst {dimension_numbers = #tpu.dot_dimension_numbers<[1], [0], [0], [1], [0, 0, 1, 1], [], []>} : vector<8x128xf32>, vector<128x128xf32>, vector<8x128xf32> -> vector<8x128xf32>
    %c0_4 = arith.constant 0 : index
    %c0_5 = arith.constant 0 : index
    %4 = vector.load %arg4[%c0_4, %c0_5] : memref<8x128xf32, #tpu.memory_space<vmem>>, vector<8x128xf32>
    tpu.vector_store %arg4[%c0_4, %c0_5], %3 {strides = array<i32>} : memref<8x128xf32, #tpu.memory_space<vmem>>, vector<8x128xf32>,
    return
  }
  func.func @transform_0(%arg0: i32, %arg1: memref<4xi32, #tpu.memory_space<smem>>) -> (i32, i32) {
    %c0_i32 = arith.constant 0 : i32
    %c0_i32_0 = arith.constant 0 : i32
    return %arg0, %c0_i32 : i32, i32
  }
  func.func @transform_1(%arg0: i32, %arg1: memref<4xi32, #tpu.memory_space<smem>>) -> (i32, i32, i32) {
    %0 = arith.index_cast %arg0 : i32 to index
    %1 = memref.load %arg1[%0] : memref<4xi32, #tpu.memory_space<smem>>
    %c0_i32 = arith.constant 0 : i32
    %c0_i32_0 = arith.constant 0 : i32
    %c0_i32_1 = arith.constant 0 : i32
    return %1, %c0_i32, %c0_i32_0 : i32, i32, i32
  }
  func.func @transform_2(%arg0: i32, %arg1: memref<4xi32, #tpu.memory_space<smem>>) -> (i32, i32) {
    %c0_i32 = arith.constant 0 : i32
    %c0_i32_0 = arith.constant 0 : i32
    return %arg0, %c0_i32 : i32, i32
  }
}

</mosaic_0001>

<llo_original>
// kernel: tpu_custom_call.1
$region0: #{tpu_custom_call.1}
  #allocation0 [shape = 'u32[]', space=smem, size = 0x4, offset = 0x4, fixed_abs, tag = 'smem constant byte address 0x4 - core index']
  #allocation1 [shape = 'u32[144,128]{1,0:T(1,128)}', space=vmem, size = 0x12000, scoped, tag = 'internal scratch']
  #allocation2 [shape = 's32[1]{0}', space=sflag, size = 0x4, scoped, tag = 'scoped memory for tpu_custom_call.1']
  #allocation3 [shape = 'u8[512]{0}', space=smem, size = 0x200, scoped, tag = 'prefetched SMEM operand 0']
  %s0 = inlined_call_operand.hbm [shape: s32[4], index: 0, kind: input, shape index: {}]
  %s1 = inlined_call_operand.hbm [shape: f32[32,128], index: 1, kind: input, shape index: {}]
  %s2 = inlined_call_operand.hbm [shape: f32[8,128,128], index: 2, kind: input, shape index: {}]
  %s3 = inlined_call_operand.hbm [shape: f32[32,128], index: 3, kind: output, shape index: {}]
  %s4 = sld [smem:[#allocation0]]
  $region49: #{tpu_custom_call.1} parent=0
    _
  %s6 = ssub.s32 1, %s4
  %s7 = scalar_select 0, %s6, %s4
  %9 = dma.hbm_to_smem %s0, 16, [#allocation3], [#allocation2]
  %10 = dma.done [#allocation2], 16
  %11 = sfence
  $region1: #{tpu_custom_call.1} parent=0
    #allocation4 [shape = 'u8[8192]{0}', space=vmem, size = 0x2000, scoped, tag = 'input window, operand 1']
    #allocation5 [shape = 's32[2]{0}', space=sflag, size = 0x8, scoped, tag = 'scoped memory for tpu_custom_call.1']
    #allocation6 [shape = 's32[2]{0}', space=sflag, size = 0x8, scoped, tag = 'scoped memory for tpu_custom_call.1']
    #allocation7 [shape = 'u8[131072]{0}', space=vmem, size = 0x20000, scoped, tag = 'input window, operand 2']
    #allocation8 [shape = 's32[2]{0}', space=sflag, size = 0x8, scoped, tag = 'scoped memory for tpu_custom_call.1']
    #allocation9 [shape = 'u8[8192]{0}', space=vmem, size = 0x2000, scoped, tag = 'output window, operand 0']
    %12 = vsyncpa [#allocation5], 0
    %s13 = scalar_lea.sflag [#allocation5], 1
    %14 = vsyncpa %s13, 0
    %15 = vsyncpa [#allocation8], 0
    %s16 = scalar_lea.sflag [#allocation8], 1
    %17 = vsyncpa %s16, 0
    %18 = vsyncpa [#allocation6], 0
    %s19 = scalar_lea.sflag [#allocation6], 1
    %20 = vsyncpa %s19, 0
    loop: start=0, step=1, limit=6
    $region2: #{tpu_custom_call.1} parent=1 // loop_pre_header
      _
    $region3: #{tpu_custom_call.1} parent=1 // loop_header
      %s22 = sphi 0, %s26
      %p23 = scmp.ge.s32.totalorder %s22, 6
      %s32 = sphi 0, %s34
      %s35 = sphi 0, %s32
      %s36 = sphi 0, %s35
      %s52 = sphi 0, %s36
      %s60 = sphi 0, %s62
      %s63 = sphi 0, %s60
      %s64 = sphi 0, %s63
      %s80 = sphi 0, %s64
      %s86 = sphi 0, %s88
      %s89 = sphi 0, %s86
      %s90 = sphi 0, %s89
      %s106 = sphi 0, %s90
    $region4: #{tpu_custom_call.1} parent=1 // loop_header_branch
      %25 = sbr.rel (%p23) target = $region8
    $region5: #{tpu_custom_call.1} parent=1 // loop_body
      %s27 = ssub.s32 %s22, 1
      %s28 = ssub.s32 %s22, 2
      %s29 = sadd.s32 %s22, 1
      %s30 = ssub.s32 %s22, %s29
      %p31 = scmp.eq.s32.totalorder %s30, 0
      %s33 = sadd.s32 %s32, 1
      %s34 = scalar_select %p31, %s32, %s33
      %p37 = pneg %p31
      %p38 = scmp.eq.s32.totalorder %s22, 3
      %p39 = por %p37, %p38
      %p40 = scmp.ne.s32.totalorder %s32, %s35
      %p41 = scmp.eq.s32.totalorder %s22, 0
      %p42 = por %p40, %p41
      %p43 = scmp.ne.s32.totalorder %s32, %s35
      %p44 = scmp.eq.s32.totalorder %s27, 3
      %p45 = por %p43, %p44
      %p46 = scmp.ne.s32.totalorder %s35, %s36
      %p47 = scmp.eq.s32.totalorder %s27, 0
      %p48 = por %p46, %p47
      %p49 = scmp.ne.s32.totalorder %s35, %s36
      %p50 = scmp.eq.s32.totalorder %s28, 3
      %p51 = por %p49, %p50
      %p53 = scmp.ne.s32.totalorder %s36, %s52
      %p54 = scmp.eq.s32.totalorder %s28, 0
      %p55 = por %p53, %p54
      %s56 = sld [smem:[#allocation3 + %s22]]
      %s57 = sld [smem:[#allocation3 + %s29]]
      %s58 = ssub.s32 %s56, %s57
      %p59 = scmp.eq.s32.totalorder %s58, 0
      %s61 = sadd.s32 %s60, 1
      %s62 = scalar_select %p59, %s60, %s61
      %p65 = pneg %p59
      %p66 = scmp.eq.s32.totalorder %s22, 3
      %p67 = por %p65, %p66
      %p68 = scmp.ne.s32.totalorder %s60, %s63
      %p69 = scmp.eq.s32.totalorder %s22, 0
      %p70 = por %p68, %p69
      %p71 = scmp.ne.s32.totalorder %s60, %s63
      %p72 = scmp.eq.s32.totalorder %s27, 3
      %p73 = por %p71, %p72
      %p74 = scmp.ne.s32.totalorder %s63, %s64
      %p75 = scmp.eq.s32.totalorder %s27, 0
      %p76 = por %p74, %p75
      %p77 = scmp.ne.s32.totalorder %s63, %s64
      %p78 = scmp.eq.s32.totalorder %s28, 3
      %p79 = por %p77, %p78
      %p81 = scmp.ne.s32.totalorder %s64, %s80
      %p82 = scmp.eq.s32.totalorder %s28, 0
      %p83 = por %p81, %p82
      %s84 = ssub.s32 %s22, %s29
      %p85 = scmp.eq.s32.totalorder %s84, 0
      %s87 = sadd.s32 %s86, 1
      %s88 = scalar_select %p85, %s86, %s87
      %p91 = pneg %p85
      %p92 = scmp.eq.s32.totalorder %s22, 3
      %p93 = por %p91, %p92
      %p94 = scmp.ne.s32.totalorder %s86, %s89
      %p95 = scmp.eq.s32.totalorder %s22, 0
      %p96 = por %p94, %p95
      %p97 = scmp.ne.s32.totalorder %s86, %s89
      %p98 = scmp.eq.s32.totalorder %s27, 3
      %p99 = por %p97, %p98
      %p100 = scmp.ne.s32.totalorder %s89, %s90
      %p101 = scmp.eq.s32.totalorder %s27, 0
      %p102 = por %p100, %p101
      %p103 = scmp.ne.s32.totalorder %s89, %s90
      %p104 = scmp.eq.s32.totalorder %s28, 3
      %p105 = por %p103, %p104
      %p107 = scmp.ne.s32.totalorder %s90, %s106
      %p108 = scmp.eq.s32.totalorder %s28, 0
      %p109 = por %p107, %p108
      %p110 = scmp.le.s32.totalorder 1, %s22
      %p111 = scmp.lt.s32.totalorder %s22, 5
      %p112 = pnand %p110, %p111
      %p113 = pneg %p112
      // Predicated region
      $region9: #{tpu_custom_call.1} parent=5 // pred_check
        _
      $region10: #{tpu_custom_call.1} parent=5 // pred_check_branch
        %115 = sbr.rel (%p112) target = $region12
      $region11: #{tpu_custom_call.1} parent=5 // pred_region
        %s116 = ssub.s32 %s22, 1
      $region12: #{tpu_custom_call.1} parent=5 // pred_fallthru
        _
      %p117 = scmp.lt.s32.totalorder %s22, 4
      // Predicated region
      $region13: #{tpu_custom_call.1} parent=5 // pred_check
        %p118 = pneg %p117
      $region14: #{tpu_custom_call.1} parent=5 // pred_check_branch
        %120 = sbr.rel (%p118) target = $region16
      $region15: #{tpu_custom_call.1} parent=5 // pred_region
        // Predicated region
        $region17: #{tpu_custom_call.1} parent=15 // pred_check
          %p121 = pneg %p42
        $region18: #{tpu_custom_call.1} parent=15 // pred_check_branch
          %123 = sbr.rel (%p121) target = $region20
        $region19: #{tpu_custom_call.1} parent=15 // pred_region
          %s124 = sand.u32 %s32, 1
          %s125 = scalar_lea.sflag [#allocation5], %s124
          %s126 = sand.u32 %s32, 1
          %s127 = smul.addr %s126, 8
          %s128 = scalar_lea.vmem [#allocation4], %s127
          %s130 = ssub.s32 128, 128
          %131 = vsyncadd %s125, %s130
          %s132 = smul.addr %s22, 128
          %s133 = scalar_lea.hbm %s1, %s132
          %s135 = sshll.u32 %s128, 4
          %s136 = int_to_ptr.vmem [resolvable:$true] %s135
          %138 = dma.hbm_to_vmem [thread:$0]  %s133, 128, %s136, %s125
        $region20: #{tpu_custom_call.1} parent=15 // pred_fallthru
          _
        // Predicated region
        $region21: #{tpu_custom_call.1} parent=15 // pred_check
          %p139 = pneg %p70
        $region22: #{tpu_custom_call.1} parent=15 // pred_check_branch
          %141 = sbr.rel (%p139) target = $region24
        $region23: #{tpu_custom_call.1} parent=15 // pred_region
          %s142 = sand.u32 %s60, 1
          %s143 = scalar_lea.sflag [#allocation8], %s142
          %s144 = sand.u32 %s60, 1
          %s145 = smul.addr %s144, 128
          %s146 = scalar_lea.vmem [#allocation7], %s145
          %s147 = sld [smem:[#allocation3 + %s22]]
          %s149 = ssub.s32 2048, 2048
          %150 = vsyncadd %s143, %s149
          %s151 = smul.addr %s147, 16
          %s152 = smul.addr %s151, 128
          %s153 = scalar_lea.hbm %s2, %s152
          %s154 = sshll.u32 %s146, 4
          %s155 = int_to_ptr.vmem [resolvable:$true] %s154
          %160 = dma.hbm_to_vmem [thread:$0]  %s153, 2048, %s155, %s143, 128, 128, 8
        $region24: #{tpu_custom_call.1} parent=15 // pred_fallthru
          _
      $region16: #{tpu_custom_call.1} parent=5 // pred_fallthru
        _
      %p161 = scmp.le.s32.totalorder 1, %s22
      %p162 = scmp.lt.s32.totalorder %s22, 5
      %p163 = pnand %p161, %p162
      %p164 = pneg %p163
      // Predicated region
      $region25: #{tpu_custom_call.1} parent=5 // pred_check
        _
      $region26: #{tpu_custom_call.1} parent=5 // pred_check_branch
        %166 = sbr.rel (%p163) target = $region28
      $region27: #{tpu_custom_call.1} parent=5 // pred_region
        %s167 = ssub.s32 %s22, 1
        %s168 = sand.u32 %s35, 1
        %s169 = scalar_lea.sflag [#allocation5], %s168
        %s170 = sand.u32 %s35, 1
        %s171 = smul.addr %s170, 8
        %s172 = scalar_lea.vmem [#allocation4], %s171
        // Predicated region
        $region29: #{tpu_custom_call.1} parent=27 // pred_check
          %p173 = pneg %p48
        $region30: #{tpu_custom_call.1} parent=27 // pred_check_branch
          %175 = sbr.rel (%p173) target = $region32
        $region31: #{tpu_custom_call.1} parent=27 // pred_region
          %176 = dma.done %s169, 128
        $region32: #{tpu_custom_call.1} parent=27 // pred_fallthru
          _
        %s177 = sand.u32 %s63, 1
        %s178 = scalar_lea.sflag [#allocation8], %s177
        %s179 = sand.u32 %s63, 1
        %s180 = smul.addr %s179, 128
        %s181 = scalar_lea.vmem [#allocation7], %s180
        // Predicated region
        $region33: #{tpu_custom_call.1} parent=27 // pred_check
          %p182 = pneg %p76
        $region34: #{tpu_custom_call.1} parent=27 // pred_check_branch
          %184 = sbr.rel (%p182) target = $region36
        $region35: #{tpu_custom_call.1} parent=27 // pred_region
          %185 = dma.done %s178, 2048
        $region36: #{tpu_custom_call.1} parent=27 // pred_fallthru
          _
        %s186 = sand.u32 %s35, 1
        %s187 = scalar_lea.sflag [#allocation5], %s186
        %s188 = sand.u32 %s35, 1
        %s189 = smul.addr %s188, 8
        %s190 = scalar_lea.vmem [#allocation4], %s189
        %p191 = pneg %p48
        %p192 = pneg %p45
        %s193 = sand.u32 %s63, 1
        %s194 = scalar_lea.sflag [#allocation8], %s193
        %s195 = sand.u32 %s63, 1
        %s196 = smul.addr %s195, 128
        %s197 = scalar_lea.vmem [#allocation7], %s196
        %p198 = pneg %p76
        %p199 = pneg %p73
        %p200 = pneg %p102
        %p201 = pneg %p99
        %s202 = sand.u32 %s89, 1
        %s203 = scalar_lea.sflag [#allocation6], %s202
        %s204 = sand.u32 %s89, 1
        %s205 = smul.addr %s204, 8
        %s206 = scalar_lea.vmem [#allocation9], %s205
        %s207 = sld [smem:[#allocation3 + %s27]]
        %v208 = vld [vmem:[%s172] sm:$0xff]
        %v209 = vld [vmem:[%s181] sm:$0xff]
        %v210 = vld [vmem:[%s181 + $0x8] sm:$0xff]
        %v211 = vld [vmem:[%s181 + $0x10] sm:$0xff]
        %v212 = vld [vmem:[%s181 + $0x18] sm:$0xff]
        %v213 = vld [vmem:[%s181 + $0x20] sm:$0xff]
        %v214 = vld [vmem:[%s181 + $0x28] sm:$0xff]
        %v215 = vld [vmem:[%s181 + $0x30] sm:$0xff]
        %v216 = vld [vmem:[%s181 + $0x38] sm:$0xff]
        %v217 = vld [vmem:[%s181 + $0x40] sm:$0xff]
        %v218 = vld [vmem:[%s181 + $0x48] sm:$0xff]
        %v219 = vld [vmem:[%s181 + $0x50] sm:$0xff]
        %v220 = vld [vmem:[%s181 + $0x58] sm:$0xff]
        %v221 = vld [vmem:[%s181 + $0x60] sm:$0xff]
        %v222 = vld [vmem:[%s181 + $0x68] sm:$0xff]
        %v223 = vld [vmem:[%s181 + $0x70] sm:$0xff]
        %v224 = vld [vmem:[%s181 + $0x78] sm:$0xff]
        %225 = vmatprep.subr.mxu0 0.0
        %226 = vmatpush1.msra.mxu0 %v224
        %227 = vmatprep.subr.mxu0 0.0
        %228 = vmatpush1.msra.mxu0 %v223
        %229 = vmatprep.subr.mxu0 0.0
        %230 = vmatpush1.msra.mxu0 %v222
        %231 = vmatprep.subr.mxu0 0.0
        %232 = vmatpush1.msra.mxu0 %v221
        %233 = vmatprep.subr.mxu0 0.0
        %234 = vmatpush1.msra.mxu0 %v220
        %235 = vmatprep.subr.mxu0 0.0
        %236 = vmatpush1.msra.mxu0 %v219
        %237 = vmatprep.subr.mxu0 0.0
        %238 = vmatpush1.msra.mxu0 %v218
        %239 = vmatprep.subr.mxu0 0.0
        %240 = vmatpush1.msra.mxu0 %v217
        %241 = vmatprep.subr.mxu0 0.0
        %242 = vmatpush1.msra.mxu0 %v216
        %243 = vmatprep.subr.mxu0 0.0
        %244 = vmatpush1.msra.mxu0 %v215
        %245 = vmatprep.subr.mxu0 0.0
        %246 = vmatpush1.msra.mxu0 %v214
        %247 = vmatprep.subr.mxu0 0.0
        %248 = vmatpush1.msra.mxu0 %v213
        %249 = vmatprep.subr.mxu0 0.0
        %250 = vmatpush1.msra.mxu0 %v212
        %251 = vmatprep.subr.mxu0 0.0
        %252 = vmatpush1.msra.mxu0 %v211
        %253 = vmatprep.subr.mxu0 0.0
        %254 = vmatpush1.msra.mxu0 %v210
        %255 = vmatprep.subr.mxu0 0.0
        %256 = vmatpush1.msra.mxu0 %v209
        %257 = vmatprep.subr.mxu0 0.0
        %258 = vmatpush2.msra.mxu0 0.0
        %259 = vmatprep.subr.mxu0 0.0
        %260 = vmatpush2.msra.mxu0 0.0
        %261 = vmatprep.subr.mxu0 0.0
        %262 = vmatpush2.msra.mxu0 0.0
        %263 = vmatprep.subr.mxu0 0.0
        %264 = vmatpush2.msra.mxu0 0.0
        %265 = vmatprep.subr.mxu0 0.0
        %266 = vmatpush2.msra.mxu0 0.0
        %267 = vmatprep.subr.mxu0 0.0
        %268 = vmatpush2.msra.mxu0 0.0
        %269 = vmatprep.subr.mxu0 0.0
        %270 = vmatpush2.msra.mxu0 0.0
        %271 = vmatprep.subr.mxu0 0.0
        %272 = vmatpush2.msra.mxu0 0.0
        %273 = vmatprep.subr.mxu0 0.0
        %274 = vmatpush2.msra.mxu0 0.0
        %275 = vmatprep.subr.mxu0 0.0
        %276 = vmatpush2.msra.mxu0 0.0
        %277 = vmatprep.subr.mxu0 0.0
        %278 = vmatpush2.msra.mxu0 0.0
        %279 = vmatprep.subr.mxu0 0.0
        %280 = vmatpush2.msra.mxu0 0.0
        %281 = vmatprep.subr.mxu0 0.0
        %282 = vmatpush2.msra.mxu0 0.0
        %283 = vmatprep.subr.mxu0 0.0
        %284 = vmatpush2.msra.mxu0 0.0
        %285 = vmatprep.subr.mxu0 0.0
        %286 = vmatpush2.msra.mxu0 0.0
        %287 = vmatprep.subr.mxu0 0.0
        %288 = vmatpush2.msra.mxu0 0.0
        %289 = vmatprep.mubr.f32.mxu0 0.0
        %290 = vmatmul.mubr.f32.gmra.mxu0 %v208
        %v291 = vpop.f32.mrf.mxu0
        %v292 = vadd.f32 0.0, %v291
        %v293 = vpop.f32.mrf.mxu0
        %294 = vdwg.mxu0
        %295 = vst [vmem:[%s206] sm:$0xff] %v292
        %s296 = sand.u32 %s89, 1
        %s297 = scalar_lea.sflag [#allocation6], %s296
        %s298 = sand.u32 %s89, 1
        %s299 = smul.addr %s298, 8
        %s300 = scalar_lea.vmem [#allocation9], %s299
        // Predicated region
        $region37: #{tpu_custom_call.1} parent=27 // pred_check
          %p301 = pneg %p99
        $region38: #{tpu_custom_call.1} parent=27 // pred_check_branch
          %303 = sbr.rel (%p301) target = $region40
        $region39: #{tpu_custom_call.1} parent=27 // pred_region
          %s305 = ssub.s32 128, 128
          %306 = vsyncadd %s297, %s305
          %s307 = smul.addr %s27, 128
          %s308 = scalar_lea.hbm %s3, %s307
          %s310 = sshll.u32 %s300, 4
          %s311 = int_to_ptr.vmem [resolvable:$true] %s310
          %313 = dma.vmem_to_hbm [thread:$0]  %s311, 128, %s308, %s297
        $region40: #{tpu_custom_call.1} parent=27 // pred_fallthru
          _
      $region28: #{tpu_custom_call.1} parent=5 // pred_fallthru
        _
      %p314 = scmp.le.s32.totalorder 2, %s22
      // Predicated region
      $region41: #{tpu_custom_call.1} parent=5 // pred_check
        %p315 = pneg %p314
      $region42: #{tpu_custom_call.1} parent=5 // pred_check_branch
        %317 = sbr.rel (%p315) target = $region44
      $region43: #{tpu_custom_call.1} parent=5 // pred_region
        %s318 = ssub.s32 %s22, 2
        // Predicated region
        $region45: #{tpu_custom_call.1} parent=43 // pred_check
          %p319 = pneg %p105
        $region46: #{tpu_custom_call.1} parent=43 // pred_check_branch
          %321 = sbr.rel (%p319) target = $region48
        $region47: #{tpu_custom_call.1} parent=43 // pred_region
          %s322 = sand.u32 %s90, 1
          %s323 = scalar_lea.sflag [#allocation6], %s322
          %s324 = sand.u32 %s90, 1
          %s325 = smul.addr %s324, 8
          %s326 = scalar_lea.vmem [#allocation9], %s325
          %327 = dma.done %s323, 128
        $region48: #{tpu_custom_call.1} parent=43 // pred_fallthru
          _
      $region44: #{tpu_custom_call.1} parent=5 // pred_fallthru
        _
    $region6: #{tpu_custom_call.1} parent=1 // loop_footer
      %s26 = sadd.s32 1, %s22
    $region7: #{tpu_custom_call.1} parent=1 // loop_footer_branch
      %21 = sbr.rel target = $region3
    $region8: #{tpu_custom_call.1} parent=1 // loop_exit
      _
    %328 = vsyncpa [#allocation5], 1
    %s329 = scalar_lea.sflag [#allocation5], 1
    %330 = vsyncpa %s329, 1
    %331 = vsyncpa [#allocation8], 1
    %s332 = scalar_lea.sflag [#allocation8], 1
    %333 = vsyncpa %s332, 1
    %334 = vsyncpa [#allocation6], 1
    %s335 = scalar_lea.sflag [#allocation6], 1
    %336 = vsyncpa %s335, 1

</llo_original>
